<compile_context>
chip_gen: v7x
topology: tpu7x:2x2x1
jax: 0.10.0
libtpu: 0.0.40
codegen_flags: <defaults>
</compile_context>

<pallas_src>
import functools

import jax
import jax.numpy as jnp
from jax.experimental import pallas as pl
from jax.experimental.pallas import tpu as pltpu

# Large-but-finite mask value: padded slots get attention weight exactly 0
# (same observable behaviour as torch's -finfo.max) without producing NaN when
# the logit difference is formed.
_NEG_INF = -1e30
_REF_MASK_VALUE = float(-jnp.finfo(jnp.float32).max)

_CHUNK = 256  # pairing-matmul chunk: multiple of 128 lanes, MXU-width friendly


def _round_up(x, m):
    return (x + m - 1) // m * m


def _attention_pool_kernel(w_ref, p_ref, x_ref, o_ref, *, lane_tile, n_valid):
    """One (batch row, lane tile) block.

    w_ref: (d, d)               1x1-conv weight, VMEM-resident (constant index)
    p_ref: (CHUNK, CHUNK//2)    0/1 adjacent-pair-sum matrix, VMEM-resident
    x_ref: (1, d, lane_tile)    contiguous slab of x in native layout/dtype
    o_ref: (1, d, lane_tile//2) pooled output tile
    """
    j = pl.program_id(1)
    x = x_ref[0]                                          # (d, lane_tile)

    # 1x1 conv over channels == one fused MXU matmul for every pool slot.
    logits = jnp.dot(w_ref[...], x, preferred_element_type=jnp.float32)

    # Validity from the static sequence length: covers both the reference's
    # odd-length padded slot and the ragged last grid tile (OOB reads).
    lane = jax.lax.broadcasted_iota(jnp.int32, (1, lane_tile), 1)
    valid = (j * lane_tile + lane) < n_valid              # (1, lane_tile)
    logits = jnp.where(valid, logits, _NEG_INF)

    # Partner logit = the other lane of the (2k, 2k+1) pool pair. Selecting on
    # the rolled lane index keeps the pairing independent of the roll-direction
    # convention; the extra iota roll is a (1, lane_tile) int32 -> nearly free.
    val_p = pltpu.roll(logits, 1, 1)
    val_m = pltpu.roll(logits, lane_tile - 1, 1)          # == roll by -1
    idx_p = pltpu.roll(lane, 1, 1)
    partner = jnp.where(idx_p == (lane ^ 1), val_p, val_m)

    # Softmax over a pair is exactly a sigmoid of the logit difference.
    # Masked self -> sigmoid(-1e30) = 0 ; masked partner -> sigmoid(+1e30) = 1.
    attn = jax.nn.sigmoid(logits - partner)               # f32, EUP exp

    # Weighted values in x's dtype. Zero invalid lanes so OOB garbage (which
    # may be NaN/Inf and is NOT neutralised by attn == 0) never reaches a
    # valid output column of the pairing matmul.
    weighted = jnp.where(valid, x * attn.astype(x.dtype), jnp.zeros_like(x))

    # Sum adjacent lane pairs and compact 2:1, one 256-lane chunk at a time
    # (block-diagonal pairing => chunked matmuls cost half the MXU flops of a
    # single (lane_tile, lane_tile//2) contraction at lane_tile=512).
    half = _CHUNK // 2
    for c in range(lane_tile // _CHUNK):
        blk = weighted[:, c * _CHUNK:(c + 1) * _CHUNK]
        pooled = jnp.dot(blk, p_ref[...], preferred_element_type=jnp.float32)
        o_ref[0, :, c * half:(c + 1) * half] = pooled.astype(o_ref.dtype)


def attention_pool(x, conv_weight, pool_size=2):
    """x: (b, d, n), conv_weight: (d, d, 1, 1). Returns (b, d, ceil(n / 2))."""
    if pool_size != 2:
        # TODO(synk): the reference module's "pad by remainder" only yields a
        # pool-divisible length for pool_size=2; generalise if ever needed.
        raise NotImplementedError("attention_pool kernel supports pool_size=2")

    b, d, n = x.shape
    n_out = pl.cdiv(n, pool_size)

    # Matmul operands in x's dtype (bf16 stays bf16 on the MXU); accumulation
    # is f32 inside the kernel. The dirac*2 weight is exact in bf16.
    w = conv_weight.reshape(d, d).astype(x.dtype)

    # lane_tile: multiple of 256 so output tiles are lane-dense (multiple of
    # 128) and the fused conv matmul fills the 256-wide MXU. Small-d cases get
    # bigger tiles to amortise the ~0.35us per-grid-step overhead.
    # TODO(synk): for very small d also block several batch rows per grid step.
    target = 2048 if d <= 256 else 512
    lane_tile = min(target, _round_up(n, _CHUNK))
    n_tiles = pl.cdiv(n, lane_tile)

    # Constant 0/1 matrix summing adjacent lane pairs within one chunk:
    # P[l, k] = (l // 2 == k). Exact in bf16.
    pair_sum = (
        (jnp.arange(_CHUNK)[:, None] // pool_size)
        == jnp.arange(_CHUNK // pool_size)[None, :]
    ).astype(x.dtype)

    # Explicit VMEM budget: double-buffered x/out tiles, resident w & P
    # (conservatively counted double-buffered), plus f32 in-kernel temporaries.
    # Clamped to 60 MiB so it also fits v7x's 64 MiB physical VMEM.
    # TODO(synk): mark the constant w/P specs pl.Buffered(1) to drop their
    # second buffer at very large d on v5e/v7x.
    xb = jnp.dtype(x.dtype).itemsize
    est = (2 * d * lane_tile * xb              # x double buffer
           + 2 * d * (lane_tile // 2) * xb     # out double buffer
           + 2 * d * d * xb                    # resident weight
           + 2 * _CHUNK * (_CHUNK // 2) * xb   # resident pairing matrix
           + 6 * d * lane_tile * 4)            # f32 temporaries headroom
    vmem_limit = int(min(60 * 2**20, max(32 * 2**20, 2 * est)))

    kernel = functools.partial(
        _attention_pool_kernel, lane_tile=lane_tile, n_valid=n
    )

    return pl.pallas_call(
        kernel,
        out_shape=jax.ShapeDtypeStruct((b, d, n_out), x.dtype),
        grid_spec=pltpu.PrefetchScalarGridSpec(
            num_scalar_prefetch=0,
            grid=(b, n_tiles),
            in_specs=[
                pl.BlockSpec((d, d), lambda i, j: (0, 0)),                # resident
                pl.BlockSpec((_CHUNK, _CHUNK // 2), lambda i, j: (0, 0)), # resident
                pl.BlockSpec((1, d, lane_tile), lambda i, j: (i, 0, j)),
            ],
            out_specs=pl.BlockSpec((1, d, lane_tile // 2), lambda i, j: (i, 0, j)),
        ),
        compiler_params=pltpu.CompilerParams(
            dimension_semantics=("parallel", "parallel"),
            vmem_limit_bytes=vmem_limit,
        ),
    )(w, pair_sum, x)


def _reference_attention_pool(x, conv_weight, pool_size=2):
    """Pure-JAX transcription of the PyTorch forward, for verification."""
    b, d, n = x.shape
    w = conv_weight.reshape(d, d)
    remainder = n % pool_size
    needs_padding = remainder > 0
    mask = None
    if needs_padding:
        x = jnp.pad(x, ((0, 0), (0, 0), (0, remainder)))
        mask = jnp.zeros((b, 1, n), dtype=bool)
        mask = jnp.pad(mask, ((0, 0), (0, 0), (0, remainder)), constant_values=True)
    n_pad = x.shape[-1]
    n_pooled = n_pad // pool_size
    xp = x.reshape(b, d, n_pooled, pool_size)
    logits = jnp.einsum("oc,bcnp->bonp", w, xp)
    if needs_padding:
        mp = mask.reshape(b, 1, n_pooled, pool_size)
        logits = jnp.where(mp, _REF_MASK_VALUE, logits)
    attn = jax.nn.softmax(logits, axis=-1)
    return (xp * attn).sum(axis=-1)


if __name__ == "__main__":
    key = jax.random.PRNGKey(0)
    b, pool_size = 2, 2

    cases = [
        (32, 15, jnp.float32),     # odd n: padding/mask path, single ragged tile
        (32, 16, jnp.float32),     # even n: clean path
        (32, 515, jnp.float32),    # ragged tile + multi-chunk pairing
        (32, 2200, jnp.bfloat16),  # multi-tile grid + bf16 MXU path
    ]
    for idx, (dim, n, dt) in enumerate(cases):
        # Deterministic params, same as the module: Conv2d(dim, dim, 1,
        # bias=False), dirac_ init then *2 -> weight[o, c, 0, 0] = 2 * (o == c).
        conv_weight = (2.0 * jnp.eye(dim, dtype=jnp.float32)).reshape(dim, dim, 1, 1)
        kx = jax.random.fold_in(key, idx)
        x = jax.random.normal(kx, (b, dim, n), dtype=jnp.float32).astype(dt)

        out = jax.block_until_ready(attention_pool(x, conv_weight, pool_size))
        ref = _reference_attention_pool(
            x.astype(jnp.float32), conv_weight, pool_size
        )

        n_out = (n + pool_size - 1) // pool_size
        assert out.shape == (b, dim, n_out), (out.shape, (b, dim, n_out))
        tol = 3e-2 if dt == jnp.bfloat16 else 1e-4
        assert jnp.allclose(out.astype(jnp.float32), ref, rtol=tol, atol=tol), (
            f"mismatch: dim={dim} n={n} dtype={dt}"
        )

    print("KERNEL_OK")
</pallas_src>

<mosaic_0001>
module attributes {stable_mosaic.version = 11 : i64} {
  func.func @_attention_pool_kernel(%arg0: i32, %arg1: i32, %arg2: memref<32x32xf32, #tpu.memory_space<vmem>>, %arg3: memref<256x128xf32, #tpu.memory_space<vmem>>, %arg4: memref<1x32x256xf32, #tpu.memory_space<vmem>>, %arg5: memref<1x32x128xf32, #tpu.memory_space<vmem>>) attributes {dimension_semantics = [#tpu.dimension_semantics<parallel>, #tpu.dimension_semantics<parallel>], iteration_bounds = array<i64: 2, 1>, scalar_prefetch = 0 : i64, scratch_operands = 0 : i64, tpu.core_type = #tpu.core_type<tc>, window_params = [{pipeline_mode = #tpu.pipeline_mode<synchronous>, transform_indices = @transform_0, window_bounds = array<i64: 32, 32>}, {pipeline_mode = #tpu.pipeline_mode<synchronous>, transform_indices = @transform_1, window_bounds = array<i64: 256, 128>}, {transform_indices = @transform_2, window_bounds = array<i64: 1, 32, 256>}, {transform_indices = @transform_3, window_bounds = array<i64: 1, 32, 128>}]} {
    %c0 = arith.constant 0 : index
    %c0_0 = arith.constant 0 : index
    %c0_1 = arith.constant 0 : index
    %0 = vector.load %arg4[%c0, %c0_0, %c0_1] : memref<1x32x256xf32, #tpu.memory_space<vmem>>, vector<1x32x256xf32>
    %1 = vector.shape_cast %0 : vector<1x32x256xf32> to vector<32x256xf32>
    %c0_2 = arith.constant 0 : index
    %c0_3 = arith.constant 0 : index
    %2 = vector.load %arg2[%c0_2, %c0_3] : memref<32x32xf32, #tpu.memory_space<vmem>>, vector<32x32xf32>
    %cst = arith.constant dense<0.000000e+00> : vector<32x256xf32>
    %3 = tpu.matmul %2, %1, %cst {dimension_numbers = #tpu.dot_dimension_numbers<[1], [0], [0], [1], [0, 0, 1, 1], [], []>} : vector<32x32xf32>, vector<32x256xf32>, vector<32x256xf32> -> vector<32x256xf32>
    %4 = tpu.iota {dimensions = array<i32: 1>} : vector<1x256xi32>
    %c256_i32 = arith.constant 256 : i32
    %5 = arith.muli %arg1, %c256_i32 : i32
    %6 = vector.broadcast %5 : i32 to vector<1x256xi32>
    %7 = arith.addi %6, %4 : vector<1x256xi32>
    %c15_i32 = arith.constant 15 : i32
    %8 = vector.broadcast %c15_i32 : i32 to vector<1x256xi32>
    %9 = arith.cmpi slt, %7, %8 : vector<1x256xi32>
    %cst_4 = arith.constant -1.000000e+30 : f32
    %10 = vector.shape_cast %9 : vector<1x256xi1> to vector<1x256xi1>
    %11 = vector.broadcast %10 : vector<1x256xi1> to vector<32x256xi1>
    %12 = vector.broadcast %cst_4 : f32 to vector<32x256xf32>
    %13 = arith.select %11, %3, %12 : vector<32x256xi1>, vector<32x256xf32>
    %c1_i32 = arith.constant 1 : i32
    %14 = tpu.dynamic_rotate %13 by %c1_i32 dim 1 : vector<32x256xf32>, i32 -> vector<32x256xf32>
    %c255_i32 = arith.constant 255 : i32
    %15 = tpu.dynamic_rotate %13 by %c255_i32 dim 1 : vector<32x256xf32>, i32 -> vector<32x256xf32>
    %c1_i32_5 = arith.constant 1 : i32
    %16 = tpu.dynamic_rotate %4 by %c1_i32_5 dim 1 : vector<1x256xi32>, i32 -> vector<1x256xi32>
    %c1_i32_6 = arith.constant 1 : i32
    %17 = vector.broadcast %c1_i32_6 : i32 to vector<1x256xi32>
    %18 = arith.xori %4, %17 : vector<1x256xi32>
    %19 = arith.cmpi eq, %16, %18 : vector<1x256xi32>
    %20 = vector.shape_cast %19 : vector<1x256xi1> to vector<1x256xi1>
    %21 = vector.broadcast %20 : vector<1x256xi1> to vector<32x256xi1>
    %22 = arith.select %21, %14, %15 : vector<32x256xi1>, vector<32x256xf32>
    %23 = arith.subf %13, %22 : vector<32x256xf32>
    %24 = arith.negf %23 : vector<32x256xf32>
    %25 = math.exp %24 : vector<32x256xf32>
    %cst_7 = arith.constant 1.000000e+00 : f32
    %26 = vector.broadcast %cst_7 : f32 to vector<32x256xf32>
    %27 = arith.addf %26, %25 : vector<32x256xf32>
    %28 = arith.divf %26, %27 : vector<32x256xf32>
    %29 = arith.mulf %1, %28 : vector<32x256xf32>
    %cst_8 = arith.constant 0.000000e+00 : f32
    %30 = vector.broadcast %cst_8 : f32 to vector<32x256xf32>
    %31 = vector.shape_cast %9 : vector<1x256xi1> to vector<1x256xi1>
    %32 = vector.broadcast %31 : vector<1x256xi1> to vector<32x256xi1>
    %33 = arith.select %32, %29, %30 : vector<32x256xi1>, vector<32x256xf32>
    %c0_9 = arith.constant 0 : index
    %c0_10 = arith.constant 0 : index
    %34 = vector.load %arg3[%c0_9, %c0_10] : memref<256x128xf32, #tpu.memory_space<vmem>>, vector<256x128xf32>
    %cst_11 = arith.constant dense<0.000000e+00> : vector<32x128xf32>
    %35 = tpu.matmul %33, %34, %cst_11 {dimension_numbers = #tpu.dot_dimension_numbers<[1], [0], [0], [1], [0, 0, 1, 1], [], []>} : vector<32x256xf32>, vector<256x128xf32>, vector<32x128xf32> -> vector<32x128xf32>
    %c0_12 = arith.constant 0 : index
    %c0_13 = arith.constant 0 : index
    %c0_14 = arith.constant 0 : index
    %36 = vector.load %arg5[%c0_12, %c0_13, %c0_14] : memref<1x32x128xf32, #tpu.memory_space<vmem>>, vector<1x32x128xf32>
    %37 = vector.shape_cast %36 : vector<1x32x128xf32> to vector<32x128xf32>
    %38 = vector.shape_cast %35 : vector<32x128xf32> to vector<1x32x128xf32>
    tpu.vector_store %arg5[%c0_12, %c0_13, %c0_14], %38 {strides = array<i32>} : memref<1x32x128xf32, #tpu.memory_space<vmem>>, vector<1x32x128xf32>,
    return
  }
  func.func @transform_0(%arg0: i32, %arg1: i32) -> (i32, i32) {
    %c0_i32 = arith.constant 0 : i32
    %c0_i32_0 = arith.constant 0 : i32
    %c0_i32_1 = arith.constant 0 : i32
    return %c0_i32, %c0_i32_0 : i32, i32
  }
  func.func @transform_1(%arg0: i32, %arg1: i32) -> (i32, i32) {
    %c0_i32 = arith.constant 0 : i32
    %c0_i32_0 = arith.constant 0 : i32
    %c0_i32_1 = arith.constant 0 : i32
    return %c0_i32, %c0_i32_0 : i32, i32
  }
  func.func @transform_2(%arg0: i32, %arg1: i32) -> (i32, i32, i32) {
    %c0_i32 = arith.constant 0 : i32
    %c0_i32_0 = arith.constant 0 : i32
    return %arg0, %c0_i32, %arg1 : i32, i32, i32
  }
  func.func @transform_3(%arg0: i32, %arg1: i32) -> (i32, i32, i32) {
    %c0_i32 = arith.constant 0 : i32
    %c0_i32_0 = arith.constant 0 : i32
    return %arg0, %c0_i32, %arg1 : i32, i32, i32
  }
}

</mosaic_0001>

<llo_original>
// kernel: tpu_custom_call.1
$region0: #{tpu_custom_call.1}
  #allocation0 [shape = 'u32[]', space=smem, size = 0x4, offset = 0x4, fixed_abs, tag = 'smem constant byte address 0x4 - core index']
  #allocation1 [shape = 'u32[144,128]{1,0:T(1,128)}', space=vmem, size = 0x12000, scoped, tag = 'internal scratch']
  %s0 = inlined_call_operand.vmem [shape: f32[32,32], index: 0, kind: input, shape index: {}]
  %s1 = inlined_call_operand.hbm [shape: f32[256,128], index: 1, kind: input, shape index: {}]
  %s2 = inlined_call_operand.vmem [shape: f32[2,32,15], index: 2, kind: input, shape index: {}]
  %s3 = inlined_call_operand.vmem [shape: f32[2,32,8], index: 3, kind: output, shape index: {}]
  %s4 = sld [smem:[#allocation0]]
  $region115: #{tpu_custom_call.1} parent=0
    _
  %s6 = ssub.s32 1, %s4
  %s7 = scalar_select 0, %s6, %s4
  $region1: #{tpu_custom_call.1} parent=0
    #allocation2 [shape = 'u8[131072]{0}', space=vmem, size = 0x20000, scoped, tag = 'input window, operand 1, single buffered']
    #allocation3 [shape = 's32[2]{0}', space=sflag, size = 0x8, scoped, tag = 'scoped memory for tpu_custom_call.1']
    #allocation4 [shape = 'u8[65536]{0}', space=vmem, size = 0x10000, scoped, tag = 'input window, operand 2']
    %8 = vsyncpa [#allocation3], 0
    loop: start=0, step=1, limit=4
    $region2: #{tpu_custom_call.1} parent=1 // loop_pre_header
      _
    $region3: #{tpu_custom_call.1} parent=1 // loop_header
      %s10 = sphi 0, %s14
      %p11 = scmp.ge.s32.totalorder %s10, 4
      %s17 = sphi 0, %s29
      %s18 = sphi 0, %s25
      %s19 = sphi 0, %s17
      %s20 = sphi 0, %s18
      %s21 = sphi 0, %s19
      %s22 = sphi 0, %s20
      %s30 = sphi 0, %s30
      %s32 = sphi 0, %s30
      %s33 = sphi 0, %s32
      %s47 = sphi 0, %s33
      %s51 = sphi 0, %s51
      %s53 = sphi 0, %s51
      %s54 = sphi 0, %s53
      %s68 = sphi 0, %s54
      %s76 = sphi 0, %s78
      %s79 = sphi 0, %s76
      %s80 = sphi 0, %s79
      %s96 = sphi 0, %s80
      %s104 = sphi 0, %s106
      %s107 = sphi 0, %s104
      %s108 = sphi 0, %s107
      %s124 = sphi 0, %s108
    $region4: #{tpu_custom_call.1} parent=1 // loop_header_branch
      %13 = sbr.rel (%p11) target = $region8
    $region5: #{tpu_custom_call.1} parent=1 // loop_body
      %s15 = ssub.s32 %s10, 1
      %s16 = ssub.s32 %s10, 2
      %s23 = sadd.s32 1, %s18
      %p24 = scmp.ge.s32.totalorder %s23, 1
      %s25 = scalar_select %p24, 0, %s23
      %s26 = sadd.s32 1, %s17
      %s27 = scalar_select %p24, %s26, %s17
      %p28 = scmp.ge.s32.totalorder %s27, 2
      %s29 = scalar_select %p28, 0, %s27
      %s31 = sadd.s32 %s30, 1
      %p34 = scmp.eq.s32.totalorder %s10, 1
      %p35 = scmp.ne.s32.totalorder %s30, %s32
      %p36 = scmp.eq.s32.totalorder %s10, 0
      %p37 = por %p35, %p36
      %p38 = scmp.ne.s32.totalorder %s30, %s32
      %p39 = scmp.eq.s32.totalorder %s15, 1
      %p40 = por %p38, %p39
      %p41 = scmp.ne.s32.totalorder %s32, %s33
      %p42 = scmp.eq.s32.totalorder %s15, 0
      %p43 = por %p41, %p42
      %p44 = scmp.ne.s32.totalorder %s32, %s33
      %p45 = scmp.eq.s32.totalorder %s16, 1
      %p46 = por %p44, %p45
      %p48 = scmp.ne.s32.totalorder %s33, %s47
      %p49 = scmp.eq.s32.totalorder %s16, 0
      %p50 = por %p48, %p49
      %s52 = sadd.s32 %s51, 1
      %p55 = scmp.eq.s32.totalorder %s10, 1
      %p56 = scmp.ne.s32.totalorder %s51, %s53
      %p57 = scmp.eq.s32.totalorder %s10, 0
      %p58 = por %p56, %p57
      %p59 = scmp.ne.s32.totalorder %s51, %s53
      %p60 = scmp.eq.s32.totalorder %s15, 1
      %p61 = por %p59, %p60
      %p62 = scmp.ne.s32.totalorder %s53, %s54
      %p63 = scmp.eq.s32.totalorder %s15, 0
      %p64 = por %p62, %p63
      %p65 = scmp.ne.s32.totalorder %s53, %s54
      %p66 = scmp.eq.s32.totalorder %s16, 1
      %p67 = por %p65, %p66
      %p69 = scmp.ne.s32.totalorder %s54, %s68
      %p70 = scmp.eq.s32.totalorder %s16, 0
      %p71 = por %p69, %p70
      %s72 = ssub.s32 %s17, %s29
      %s73 = ssub.s32 %s18, %s25
      %s74 = sor.u32 %s72, %s73
      %p75 = scmp.eq.s32.totalorder %s74, 0
      %s77 = sadd.s32 %s76, 1
      %s78 = scalar_select %p75, %s76, %s77
      %p81 = pneg %p75
      %p82 = scmp.eq.s32.totalorder %s10, 1
      %p83 = por %p81, %p82
      %p84 = scmp.ne.s32.totalorder %s76, %s79
      %p85 = scmp.eq.s32.totalorder %s10, 0
      %p86 = por %p84, %p85
      %p87 = scmp.ne.s32.totalorder %s76, %s79
      %p88 = scmp.eq.s32.totalorder %s15, 1
      %p89 = por %p87, %p88
      %p90 = scmp.ne.s32.totalorder %s79, %s80
      %p91 = scmp.eq.s32.totalorder %s15, 0
      %p92 = por %p90, %p91
      %p93 = scmp.ne.s32.totalorder %s79, %s80
      %p94 = scmp.eq.s32.totalorder %s16, 1
      %p95 = por %p93, %p94
      %p97 = scmp.ne.s32.totalorder %s80, %s96
      %p98 = scmp.eq.s32.totalorder %s16, 0
      %p99 = por %p97, %p98
      %s100 = ssub.s32 %s17, %s29
      %s101 = ssub.s32 %s18, %s25
      %s102 = sor.u32 %s100, %s101
      %p103 = scmp.eq.s32.totalorder %s102, 0
      %s105 = sadd.s32 %s104, 1
      %s106 = scalar_select %p103, %s104, %s105
      %p109 = pneg %p103
      %p110 = scmp.eq.s32.totalorder %s10, 1
      %p111 = por %p109, %p110
      %p112 = scmp.ne.s32.totalorder %s104, %s107
      %p113 = scmp.eq.s32.totalorder %s10, 0
      %p114 = por %p112, %p113
      %p115 = scmp.ne.s32.totalorder %s104, %s107
      %p116 = scmp.eq.s32.totalorder %s15, 1
      %p117 = por %p115, %p116
      %p118 = scmp.ne.s32.totalorder %s107, %s108
      %p119 = scmp.eq.s32.totalorder %s15, 0
      %p120 = por %p118, %p119
      %p121 = scmp.ne.s32.totalorder %s107, %s108
      %p122 = scmp.eq.s32.totalorder %s16, 1
      %p123 = por %p121, %p122
      %p125 = scmp.ne.s32.totalorder %s108, %s124
      %p126 = scmp.eq.s32.totalorder %s16, 0
      %p127 = por %p125, %p126
      %p128 = scmp.le.s32.totalorder 1, %s10
      %p129 = scmp.lt.s32.totalorder %s10, 3
      %p130 = pnand %p128, %p129
      %p131 = pneg %p130
      // Predicated region
      $region9: #{tpu_custom_call.1} parent=5 // pred_check
        _
      $region10: #{tpu_custom_call.1} parent=5 // pred_check_branch
        %133 = sbr.rel (%p130) target = $region12
      $region11: #{tpu_custom_call.1} parent=5 // pred_region
        %s134 = ssub.s32 %s10, 1
        // Predicated region
        $region13: #{tpu_custom_call.1} parent=11 // pred_check
          %p135 = pneg %p43
        $region14: #{tpu_custom_call.1} parent=11 // pred_check_branch
          %137 = sbr.rel (%p135) target = $region16
        $region15: #{tpu_custom_call.1} parent=11 // pred_region
          _
        $region16: #{tpu_custom_call.1} parent=11 // pred_fallthru
          _
        // Predicated region
        $region17: #{tpu_custom_call.1} parent=11 // pred_check
          %p138 = pneg %p64
        $region18: #{tpu_custom_call.1} parent=11 // pred_check_branch
          %140 = sbr.rel (%p138) target = $region20
        $region19: #{tpu_custom_call.1} parent=11 // pred_region
          %s142 = ssub.s32 4096, 4096
          %143 = vsyncadd [#allocation3], %s142
          %s144 = sshll.u32 [#allocation2], 4
          %s145 = int_to_ptr.vmem [resolvable:$true] %s144
          %150 = dma.hbm_to_vmem [thread:$0]  %s1, 4096, %s145, [#allocation3], 128, 128, 8
        $region20: #{tpu_custom_call.1} parent=11 // pred_fallthru
          _
      $region12: #{tpu_custom_call.1} parent=5 // pred_fallthru
        _
      %p151 = scmp.lt.s32.totalorder %s10, 2
      // Predicated region
      $region21: #{tpu_custom_call.1} parent=5 // pred_check
        %p152 = pneg %p151
      $region22: #{tpu_custom_call.1} parent=5 // pred_check_branch
        %154 = sbr.rel (%p152) target = $region24
      $region23: #{tpu_custom_call.1} parent=5 // pred_region
        // Predicated region
        $region25: #{tpu_custom_call.1} parent=23 // pred_check
          %p155 = pneg %p86
        $region26: #{tpu_custom_call.1} parent=23 // pred_check_branch
          %157 = sbr.rel (%p155) target = $region28
        $region27: #{tpu_custom_call.1} parent=23 // pred_region
          %s158 = sand.u32 %s76, 1
          %s159 = sand.u32 %s76, 1
          %s160 = smul.addr %s159, 64
          %s161 = scalar_lea.vmem [#allocation4], %s160
          %s162 = smul.u32 2, %s18
          %s163 = ssub.s32 1, %s162
          %s164 = smul.u32 512, %s163
          %p165 = scmp.ne.s32.totalorder 0, %s164
          %s166 = smul.addr %s17, 4
          %s167 = sadd.s32 %s162, %s166
          %s168 = smul.addr %s167, 8
          %s169 = scalar_lea.vmem %s2, %s168
          %s170 = smul.u32 %s163, 8
          // Predicated region
          $region29: #{tpu_custom_call.1} parent=27 // pred_check
            %p171 = pneg %p165
          $region30: #{tpu_custom_call.1} parent=27 // pred_check_branch
            %173 = sbr.rel (%p171) target = $region32
          $region31: #{tpu_custom_call.1} parent=27 // pred_region
            %p174 = scmp.lt.u32.totalorder %s170, 8
            %p175 = pneg %p174
            // Predicated region
            $region33: #{tpu_custom_call.1} parent=31 // pred_check
              _
            $region34: #{tpu_custom_call.1} parent=31 // pred_check_branch
              %177 = sbr.rel (%p174) target = $region36
            $region35: #{tpu_custom_call.1} parent=31 // pred_region
              %s198 = sand.u32 %s170, 7
              %p199 = scmp.eq.s32.totalorder %s198, 0
              // Predicated region
              $region48: #{tpu_custom_call.1} parent=35 // pred_check
                %p200 = pneg %p199
              $region49: #{tpu_custom_call.1} parent=35 // pred_check_branch
                %202 = sbr.rel (%p200) target = $region51
              $region50: #{tpu_custom_call.1} parent=35 // pred_region
                %s203 = sshrl.u32 %s170, 3
                %s204 = sshrl.u32 %s203, 4
                // While loop
                $region52: #{tpu_custom_call.1} parent=50 // loop_pre_header
                  _
                $region53: #{tpu_custom_call.1} parent=50 // loop_header
                  %s208 = sphi 0, %s210
                  %p209 = scmp.ge.s32.totalorder %s208, %s204
                  %s213 = sphi 0, %s346
                  %s214 = sphi %s169, %s349
                  %s215 = sphi %s161, %s350
                $region54: #{tpu_custom_call.1} parent=50 // loop_header_branch
                  %212 = sbr.rel (%p209) target = $region58
                $region55: #{tpu_custom_call.1} parent=50 // loop_body
                  %v216 = vld [vmem:[%s214] sm:$0xff]
                  %217 = vst [vmem:[%s215] sm:$0xff] %v216
                  %v218 = vld [vmem:[%s214 + $0x8] sm:$0xff]
                  %219 = vst [vmem:[%s215 + $0x8] sm:$0xff] %v218
                  %v220 = vld [vmem:[%s214 + $0x10] sm:$0xff]
                  %221 = vst [vmem:[%s215 + $0x10] sm:$0xff] %v220
                  %v222 = vld [vmem:[%s214 + $0x18] sm:$0xff]
                  %223 = vst [vmem:[%s215 + $0x18] sm:$0xff] %v222
                  %v224 = vld [vmem:[%s214 + $0x20] sm:$0xff]
                  %225 = vst [vmem:[%s215 + $0x20] sm:$0xff] %v224
                  %v226 = vld [vmem:[%s214 + $0x28] sm:$0xff]
                  %227 = vst [vmem:[%s215 + $0x28] sm:$0xff] %v226
                  %v228 = vld [vmem:[%s214 + $0x30] sm:$0xff]
                  %229 = vst [vmem:[%s215 + $0x30] sm:$0xff] %v228
                  %v230 = vld [vmem:[%s214 + $0x38] sm:$0xff]
                  %231 = vst [vmem:[%s215 + $0x38] sm:$0xff] %v230
                  %v232 = vld [vmem:[%s214 + $0x40] sm:$0xff]
                  %233 = vst [vmem:[%s215 + $0x40] sm:$0xff] %v232
                  %v234 = vld [vmem:[%s214 + $0x48] sm:$0xff]
                  %235 = vst [vmem:[%s215 + $0x48] sm:$0xff] %v234
                  %v236 = vld [vmem:[%s214 + $0x50] sm:$0xff]
                  %237 = vst [vmem:[%s215 + $0x50] sm:$0xff] %v236
                  %v238 = vld [vmem:[%s214 + $0x58] sm:$0xff]
                  %239 = vst [vmem:[%s215 + $0x58] sm:$0xff] %v238
                  %v240 = vld [vmem:[%s214 + $0x60] sm:$0xff]
                  %241 = vst [vmem:[%s215 + $0x60] sm:$0xff] %v240
                  %v242 = vld [vmem:[%s214 + $0x68] sm:$0xff]
                  %243 = vst [vmem:[%s215 + $0x68] sm:$0xff] %v242
                  %v244 = vld [vmem:[%s214 + $0x70] sm:$0xff]
                  %245 = vst [vmem:[%s215 + $0x70] sm:$0xff] %v244
                  %v246 = vld [vmem:[%s214 + $0x78] sm:$0xff]
                  %247 = vst [vmem:[%s215 + $0x78] sm:$0xff] %v246
                  %v248 = vld [vmem:[%s214 + $0x8] sm:$0xff]
                  %249 = vst [vmem:[%s215 + $0x10] sm:$0xff] %v248
                  %v250 = vld [vmem:[%s214 + $0x10] sm:$0xff]
                  %251 = vst [vmem:[%s215 + $0x18] sm:$0xff] %v250
                  %v252 = vld [vmem:[%s214 + $0x18] sm:$0xff]
                  %253 = vst [vmem:[%s215 + $0x20] sm:$0xff] %v252
                  %v254 = vld [vmem:[%s214 + $0x20] sm:$0xff]
                  %255 = vst [vmem:[%s215 + $0x28] sm:$0xff] %v254
                  %v256 = vld [vmem:[%s214 + $0x28] sm:$0xff]
                  %257 = vst [vmem:[%s215 + $0x30] sm:$0xff] %v256
                  %v258 = vld [vmem:[%s214 + $0x30] sm:$0xff]
                  %259 = vst [vmem:[%s215 + $0x38] sm:$0xff] %v258
                  %v260 = vld [vmem:[%s214 + $0x38] sm:$0xff]
                  %261 = vst [vmem:[%s215 + $0x40] sm:$0xff] %v260
                  %v262 = vld [vmem:[%s214 + $0x40] sm:$0xff]
                  %263 = vst [vmem:[%s215 + $0x48] sm:$0xff] %v262
                  %v264 = vld [vmem:[%s214 + $0x48] sm:$0xff]
                  %265 = vst [vmem:[%s215 + $0x50] sm:$0xff] %v264
                  %v266 = vld [vmem:[%s214 + $0x50] sm:$0xff]
                  %267 = vst [vmem:[%s215 + $0x58] sm:$0xff] %v266
                  %v268 = vld [vmem:[%s214 + $0x58] sm:$0xff]
                  %269 = vst [vmem:[%s215 + $0x60] sm:$0xff] %v268
                  %v270 = vld [vmem:[%s214 + $0x60] sm:$0xff]
                  %271 = vst [vmem:[%s215 + $0x68] sm:$0xff] %v270
                  %v272 = vld [vmem:[%s214 + $0x68] sm:$0xff]
                  %273 = vst [vmem:[%s215 + $0x70] sm:$0xff] %v272
                  %v274 = vld [vmem:[%s214 + $0x70] sm:$0xff]
                  %275 = vst [vmem:[%s215 + $0x78] sm:$0xff] %v274
                  %v276 = vld [vmem:[%s214 + $0x78] sm:$0xff]
                  %277 = vst [vmem:[%s215 + $0x80] sm:$0xff] %v276
                  %v278 = vld [vmem:[%s214 + $0x80] sm:$0xff]
                  %279 = vst [vmem:[%s215 + $0x88] sm:$0xff] %v278
                  %v280 = vld [vmem:[%s214 + $0x10] sm:$0xff]
                  %281 = vst [vmem:[%s215 + $0x20] sm:$0xff] %v280
                  %v282 = vld [vmem:[%s214 + $0x18] sm:$0xff]
                  %283 = vst [vmem:[%s215 + $0x28] sm:$0xff] %v282
                  %v284 = vld [vmem:[%s214 + $0x20] sm:$0xff]
                  %285 = vst [vmem:[%s215 + $0x30] sm:$0xff] %v284
                  %v286 = vld [vmem:[%s214 + $0x28] sm:$0xff]
                  %287 = vst [vmem:[%s215 + $0x38] sm:$0xff] %v286
                  %v288 = vld [vmem:[%s214 + $0x30] sm:$0xff]
                  %289 = vst [vmem:[%s215 + $0x40] sm:$0xff] %v288
                  %v290 = vld [vmem:[%s214 + $0x38] sm:$0xff]
                  %291 = vst [vmem:[%s215 + $0x48] sm:$0xff] %v290
                  %v292 = vld [vmem:[%s214 + $0x40] sm:$0xff]
                  %293 = vst [vmem:[%s215 + $0x50] sm:$0xff] %v292
                  %v294 = vld [vmem:[%s214 + $0x48] sm:$0xff]
                  %295 = vst [vmem:[%s215 + $0x58] sm:$0xff] %v294
                  %v296 = vld [vmem:[%s214 + $0x50] sm:$0xff]
                  %297 = vst [vmem:[%s215 + $0x60] sm:$0xff] %v296
                  %v298 = vld [vmem:[%s214 + $0x58] sm:$0xff]
                  %299 = vst [vmem:[%s215 + $0x68] sm:$0xff] %v298
                  %v300 = vld [vmem:[%s214 + $0x60] sm:$0xff]
                  %301 = vst [vmem:[%s215 + $0x70] sm:$0xff] %v300
                  %v302 = vld [vmem:[%s214 + $0x68] sm:$0xff]
                  %303 = vst [vmem:[%s215 + $0x78] sm:$0xff] %v302
                  %v304 = vld [vmem:[%s214 + $0x70] sm:$0xff]
                  %305 = vst [vmem:[%s215 + $0x80] sm:$0xff] %v304
                  %v306 = vld [vmem:[%s214 + $0x78] sm:$0xff]
                  %307 = vst [vmem:[%s215 + $0x88] sm:$0xff] %v306
                  %v308 = vld [vmem:[%s214 + $0x80] sm:$0xff]
                  %309 = vst [vmem:[%s215 + $0x90] sm:$0xff] %v308
                  %v310 = vld [vmem:[%s214 + $0x88] sm:$0xff]
                  %311 = vst [vmem:[%s215 + $0x98] sm:$0xff] %v310
                  %v312 = vld [vmem:[%s214 + $0x18] sm:$0xff]
                  %313 = vst [vmem:[%s215 + $0x30] sm:$0xff] %v312
                  %v314 = vld [vmem:[%s214 + $0x20] sm:$0xff]
                  %315 = vst [vmem:[%s215 + $0x38] sm:$0xff] %v314
                  %v316 = vld [vmem:[%s214 + $0x28] sm:$0xff]
                  %317 = vst [vmem:[%s215 + $0x40] sm:$0xff] %v316
                  %v318 = vld [vmem:[%s214 + $0x30] sm:$0xff]
                  %319 = vst [vmem:[%s215 + $0x48] sm:$0xff] %v318
                  %v320 = vld [vmem:[%s214 + $0x38] sm:$0xff]
                  %321 = vst [vmem:[%s215 + $0x50] sm:$0xff] %v320
                  %v322 = vld [vmem:[%s214 + $0x40] sm:$0xff]
                  %323 = vst [vmem:[%s215 + $0x58] sm:$0xff] %v322
                  %v324 = vld [vmem:[%s214 + $0x48] sm:$0xff]
                  %325 = vst [vmem:[%s215 + $0x60] sm:$0xff] %v324
                  %v326 = vld [vmem:[%s214 + $0x50] sm:$0xff]
                  %327 = vst [vmem:[%s215 + $0x68] sm:$0xff] %v326
                  %v328 = vld [vmem:[%s214 + $0x58] sm:$0xff]
                  %329 = vst [vmem:[%s215 + $0x70] sm:$0xff] %v328
                  %v330 = vld [vmem:[%s214 + $0x60] sm:$0xff]
                  %331 = vst [vmem:[%s215 + $0x78] sm:$0xff] %v330
                  %v332 = vld [vmem:[%s214 + $0x68] sm:$0xff]
                  %333 = vst [vmem:[%s215 + $0x80] sm:$0xff] %v332
                  %v334 = vld [vmem:[%s214 + $0x70] sm:$0xff]
                  %335 = vst [vmem:[%s215 + $0x88] sm:$0xff] %v334
                  %v336 = vld [vmem:[%s214 + $0x78] sm:$0xff]
                  %337 = vst [vmem:[%s215 + $0x90] sm:$0xff] %v336
                  %v338 = vld [vmem:[%s214 + $0x80] sm:$0xff]
                  %339 = vst [vmem:[%s215 + $0x98] sm:$0xff] %v338
                  %v340 = vld [vmem:[%s214 + $0x88] sm:$0xff]
                  %341 = vst [vmem:[%s215 + $0xa0] sm:$0xff] %v340
                  %v342 = vld [vmem:[%s214 + $0x90] sm:$0xff]
                  %343 = vst [vmem:[%s215 + $0xa8] sm:$0xff] %v342
                  %s344 = sadd.s32 1, %s213
                  %p345 = scmp.ge.s32.totalorder %s344, %s204
                  %s346 = scalar_select %p345, 0, %s344
                  %s347 = smul.u32 %s346, 128
                  %s348 = smul.u32 %s346, 128
                  %s349 = scalar_lea.vmem %s169, %s347
                  %s350 = scalar_lea.vmem %s161, %s348 [#allocation4]
                $region56: #{tpu_custom_call.1} parent=50 // loop_footer
                  %s210 = sadd.s32 %s208, 1
                $region57: #{tpu_custom_call.1} parent=50 // loop_footer_branch
                  %207 = sbr.rel target = $region53
                $region58: #{tpu_custom_call.1} parent=50 // loop_exit
                  _
                %s351 = sshrl.u32 %s203, 4
                %s352 = sand.u32 %s203, 15
                %s353 = smul.u32 %s351, 16
                %s354 = smul.u32 128, %s353
                %s355 = sshra.s32 %s354, 4
                %s356 = scalar_lea.vmem %s169, %s355
                %s357 = smul.u32 128, %s353
                %s358 = sshra.s32 %s357, 4
                %s359 = scalar_lea.vmem %s161, %s358 [#allocation4]
                // While loop
                $region59: #{tpu_custom_call.1} parent=50 // loop_pre_header
                  _
                $region60: #{tpu_custom_call.1} parent=50 // loop_header
                  %s363 = sphi 0, %s365
                  %p364 = scmp.ge.s32.totalorder %s363, %s352
                  %s368 = sphi 0, %s381
                  %s369 = sphi %s356, %s384
                  %s370 = sphi %s359, %s385
                $region61: #{tpu_custom_call.1} parent=50 // loop_header_branch
                  %367 = sbr.rel (%p364) target = $region65
                $region62: #{tpu_custom_call.1} parent=50 // loop_body
                  %v371 = vld [vmem:[%s369] sm:$0xff]
                  %372 = vst [vmem:[%s370] sm:$0xff] %v371
                  %v373 = vld [vmem:[%s369 + $0x8] sm:$0xff]
                  %374 = vst [vmem:[%s370 + $0x10] sm:$0xff] %v373
                  %v375 = vld [vmem:[%s369 + $0x10] sm:$0xff]
                  %376 = vst [vmem:[%s370 + $0x20] sm:$0xff] %v375
                  %v377 = vld [vmem:[%s369 + $0x18] sm:$0xff]
                  %378 = vst [vmem:[%s370 + $0x30] sm:$0xff] %v377
                  %s379 = sadd.s32 1, %s368
                  %p380 = scmp.ge.s32.totalorder %s379, %s352
                  %s381 = scalar_select %p380, 0, %s379
                  %s382 = smul.u32 %s381, 8
                  %s383 = smul.u32 %s381, 8
                  %s384 = scalar_lea.vmem %s356, %s382
                  %s385 = scalar_lea.vmem %s359, %s383 [#allocation4]
                $region63: #{tpu_custom_call.1} parent=50 // loop_footer
                  %s365 = sadd.s32 %s363, 1
                $region64: #{tpu_custom_call.1} parent=50 // loop_footer_branch
                  %362 = sbr.rel target = $region60
                $region65: #{tpu_custom_call.1} parent=50 // loop_exit
                  _
              $region51: #{tpu_custom_call.1} parent=35 // pred_fallthru
                _
              %p386 = pneg %p199
              // Predicated region
              $region66: #{tpu_custom_call.1} parent=35 // pred_check
                _
              $region67: #{tpu_custom_call.1} parent=35 // pred_check_branch
                %388 = sbr.rel (%p199) target = $region69
              $region68: #{tpu_custom_call.1} parent=35 // pred_region
                %s389 = sand.u32 %s170, 7
                %s390 = ssub.s32 %s170, %s389
                %s391 = scalar_lea.vmem %s169, %s390
                %s392 = ssub.s32 %s170, %s389
                %s393 = scalar_lea.vmem %s161, %s392 [#allocation4]
                %s394 = sshrl.u32 %s170, 3
                %s395 = sshrl.u32 %s394, 4
                // While loop
                $region70: #{tpu_custom_call.1} parent=68 // loop_pre_header
                  _
                $region71: #{tpu_custom_call.1} parent=68 // loop_header
                  %s399 = sphi 0, %s401
                  %p400 = scmp.ge.s32.totalorder %s399, %s395
                  %s404 = sphi 0, %s537
                  %s405 = sphi %s169, %s540
                  %s406 = sphi %s161, %s541
                $region72: #{tpu_custom_call.1} parent=68 // loop_header_branch
                  %403 = sbr.rel (%p400) target = $region76
                $region73: #{tpu_custom_call.1} parent=68 // loop_body
                  %v407 = vld [vmem:[%s405] sm:$0xff]
                  %408 = vst [vmem:[%s406] sm:$0xff] %v407
                  %v409 = vld [vmem:[%s405 + $0x8] sm:$0xff]
                  %410 = vst [vmem:[%s406 + $0x8] sm:$0xff] %v409
                  %v411 = vld [vmem:[%s405 + $0x10] sm:$0xff]
                  %412 = vst [vmem:[%s406 + $0x10] sm:$0xff] %v411
                  %v413 = vld [vmem:[%s405 + $0x18] sm:$0xff]
                  %414 = vst [vmem:[%s406 + $0x18] sm:$0xff] %v413
                  %v415 = vld [vmem:[%s405 + $0x20] sm:$0xff]
                  %416 = vst [vmem:[%s406 + $0x20] sm:$0xff] %v415
                  %v417 = vld [vmem:[%s405 + $0x28] sm:$0xff]
                  %418 = vst [vmem:[%s406 + $0x28] sm:$0xff] %v417
                  %v419 = vld [vmem:[%s405 + $0x30] sm:$0xff]
                  %420 = vst [vmem:[%s406 + $0x30] sm:$0xff] %v419
                  %v421 = vld [vmem:[%s405 + $0x38] sm:$0xff]
                  %422 = vst [vmem:[%s406 + $0x38] sm:$0xff] %v421
                  %v423 = vld [vmem:[%s405 + $0x40] sm:$0xff]
                  %424 = vst [vmem:[%s406 + $0x40] sm:$0xff] %v423
                  %v425 = vld [vmem:[%s405 + $0x48] sm:$0xff]
                  %426 = vst [vmem:[%s406 + $0x48] sm:$0xff] %v425
                  %v427 = vld [vmem:[%s405 + $0x50] sm:$0xff]
                  %428 = vst [vmem:[%s406 + $0x50] sm:$0xff] %v427
                  %v429 = vld [vmem:[%s405 + $0x58] sm:$0xff]
                  %430 = vst [vmem:[%s406 + $0x58] sm:$0xff] %v429
                  %v431 = vld [vmem:[%s405 + $0x60] sm:$0xff]
                  %432 = vst [vmem:[%s406 + $0x60] sm:$0xff] %v431
                  %v433 = vld [vmem:[%s405 + $0x68] sm:$0xff]
                  %434 = vst [vmem:[%s406 + $0x68] sm:$0xff] %v433
                  %v435 = vld [vmem:[%s405 + $0x70] sm:$0xff]
                  %436 = vst [vmem:[%s406 + $0x70] sm:$0xff] %v435
                  %v437 = vld [vmem:[%s405 + $0x78] sm:$0xff]
                  %438 = vst [vmem:[%s406 + $0x78] sm:$0xff] %v437
                  %v439 = vld [vmem:[%s405 + $0x8] sm:$0xff]
                  %440 = vst [vmem:[%s406 + $0x10] sm:$0xff] %v439
                  %v441 = vld [vmem:[%s405 + $0x10] sm:$0xff]
                  %442 = vst [vmem:[%s406 + $0x18] sm:$0xff] %v441
                  %v443 = vld [vmem:[%s405 + $0x18] sm:$0xff]
                  %444 = vst [vmem:[%s406 + $0x20] sm:$0xff] %v443
                  %v445 = vld [vmem:[%s405 + $0x20] sm:$0xff]
                  %446 = vst [vmem:[%s406 + $0x28] sm:$0xff] %v445
                  %v447 = vld [vmem:[%s405 + $0x28] sm:$0xff]
                  %448 = vst [vmem:[%s406 + $0x30] sm:$0xff] %v447
                  %v449 = vld [vmem:[%s405 + $0x30] sm:$0xff]
                  %450 = vst [vmem:[%s406 + $0x38] sm:$0xff] %v449
                  %v451 = vld [vmem:[%s405 + $0x38] sm:$0xff]
                  %452 = vst [vmem:[%s406 + $0x40] sm:$0xff] %v451
                  %v453 = vld [vmem:[%s405 + $0x40] sm:$0xff]
                  %454 = vst [vmem:[%s406 + $0x48] sm:$0xff] %v453
                  %v455 = vld [vmem:[%s405 + $0x48] sm:$0xff]
                  %456 = vst [vmem:[%s406 + $0x50] sm:$0xff] %v455
                  %v457 = vld [vmem:[%s405 + $0x50] sm:$0xff]
                  %458 = vst [vmem:[%s406 + $0x58] sm:$0xff] %v457
                  %v459 = vld [vmem:[%s405 + $0x58] sm:$0xff]
                  %460 = vst [vmem:[%s406 + $0x60] sm:$0xff] %v459
                  %v461 = vld [vmem:[%s405 + $0x60] sm:$0xff]
                  %462 = vst [vmem:[%s406 + $0x68] sm:$0xff] %v461
                  %v463 = vld [vmem:[%s405 + $0x68] sm:$0xff]
                  %464 = vst [vmem:[%s406 + $0x70] sm:$0xff] %v463
                  %v465 = vld [vmem:[%s405 + $0x70] sm:$0xff]
                  %466 = vst [vmem:[%s406 + $0x78] sm:$0xff] %v465
                  %v467 = vld [vmem:[%s405 + $0x78] sm:$0xff]
                  %468 = vst [vmem:[%s406 + $0x80] sm:$0xff] %v467
                  %v469 = vld [vmem:[%s405 + $0x80] sm:$0xff]
                  %470 = vst [vmem:[%s406 + $0x88] sm:$0xff] %v469
                  %v471 = vld [vmem:[%s405 + $0x10] sm:$0xff]
                  %472 = vst [vmem:[%s406 + $0x20] sm:$0xff] %v471
                  %v473 = vld [vmem:[%s405 + $0x18] sm:$0xff]
                  %474 = vst [vmem:[%s406 + $0x28] sm:$0xff] %v473
                  %v475 = vld [vmem:[%s405 + $0x20] sm:$0xff]
                  %476 = vst [vmem:[%s406 + $0x30] sm:$0xff] %v475
                  %v477 = vld [vmem:[%s405 + $0x28] sm:$0xff]
                  %478 = vst [vmem:[%s406 + $0x38] sm:$0xff] %v477
                  %v479 = vld [vmem:[%s405 + $0x30] sm:$0xff]
                  %480 = vst [vmem:[%s406 + $0x40] sm:$0xff] %v479
                  %v481 = vld [vmem:[%s405 + $0x38] sm:$0xff]
                  %482 = vst [vmem:[%s406 + $0x48] sm:$0xff] %v481
                  %v483 = vld [vmem:[%s405 + $0x40] sm:$0xff]
                  %484 = vst [vmem:[%s406 + $0x50] sm:$0xff] %v483
                  %v485 = vld [vmem:[%s405 + $0x48] sm:$0xff]
                  %486 = vst [vmem:[%s406 + $0x58] sm:$0xff] %v485
                  %v487 = vld [vmem:[%s405 + $0x50] sm:$0xff]
                  %488 = vst [vmem:[%s406 + $0x60] sm:$0xff] %v487
                  %v489 = vld [vmem:[%s405 + $0x58] sm:$0xff]
                  %490 = vst [vmem:[%s406 + $0x68] sm:$0xff] %v489
                  %v491 = vld [vmem:[%s405 + $0x60] sm:$0xff]
                  %492 = vst [vmem:[%s406 + $0x70] sm:$0xff] %v491
                  %v493 = vld [vmem:[%s405 + $0x68] sm:$0xff]
                  %494 = vst [vmem:[%s406 + $0x78] sm:$0xff] %v493
                  %v495 = vld [vmem:[%s405 + $0x70] sm:$0xff]
                  %496 = vst [vmem:[%s406 + $0x80] sm:$0xff] %v495
                  %v497 = vld [vmem:[%s405 + $0x78] sm:$0xff]
                  %498 = vst [vmem:[%s406 + $0x88] sm:$0xff] %v497
                  %v499 = vld [vmem:[%s405 + $0x80] sm:$0xff]
                  %500 = vst [vmem:[%s406 + $0x90] sm:$0xff] %v499
                  %v501 = vld [vmem:[%s405 + $0x88] sm:$0xff]
                  %502 = vst [vmem:[%s406 + $0x98] sm:$0xff] %v501
                  %v503 = vld [vmem:[%s405 + $0x18] sm:$0xff]
                  %504 = vst [vmem:[%s406 + $0x30] sm:$0xff] %v503
                  %v505 = vld [vmem:[%s405 + $0x20] sm:$0xff]
                  %506 = vst [vmem:[%s406 + $0x38] sm:$0xff] %v505
                  %v507 = vld [vmem:[%s405 + $0x28] sm:$0xff]
                  %508 = vst [vmem:[%s406 + $0x40] sm:$0xff] %v507
                  %v509 = vld [vmem:[%s405 + $0x30] sm:$0xff]
                  %510 = vst [vmem:[%s406 + $0x48] sm:$0xff] %v509
                  %v511 = vld [vmem:[%s405 + $0x38] sm:$0xff]
                  %512 = vst [vmem:[%s406 + $0x50] sm:$0xff] %v511
                  %v513 = vld [vmem:[%s405 + $0x40] sm:$0xff]
                  %514 = vst [vmem:[%s406 + $0x58] sm:$0xff] %v513
                  %v515 = vld [vmem:[%s405 + $0x48] sm:$0xff]
                  %516 = vst [vmem:[%s406 + $0x60] sm:$0xff] %v515
                  %v517 = vld [vmem:[%s405 + $0x50] sm:$0xff]
                  %518 = vst [vmem:[%s406 + $0x68] sm:$0xff] %v517
                  %v519 = vld [vmem:[%s405 + $0x58] sm:$0xff]
                  %520 = vst [vmem:[%s406 + $0x70] sm:$0xff] %v519
                  %v521 = vld [vmem:[%s405 + $0x60] sm:$0xff]
                  %522 = vst [vmem:[%s406 + $0x78] sm:$0xff] %v521
                  %v523 = vld [vmem:[%s405 + $0x68] sm:$0xff]
                  %524 = vst [vmem:[%s406 + $0x80] sm:$0xff] %v523
                  %v525 = vld [vmem:[%s405 + $0x70] sm:$0xff]
                  %526 = vst [vmem:[%s406 + $0x88] sm:$0xff] %v525
                  %v527 = vld [vmem:[%s405 + $0x78] sm:$0xff]
                  %528 = vst [vmem:[%s406 + $0x90] sm:$0xff] %v527
                  %v529 = vld [vmem:[%s405 + $0x80] sm:$0xff]
                  %530 = vst [vmem:[%s406 + $0x98] sm:$0xff] %v529
                  %v531 = vld [vmem:[%s405 + $0x88] sm:$0xff]
                  %532 = vst [vmem:[%s406 + $0xa0] sm:$0xff] %v531
                  %v533 = vld [vmem:[%s405 + $0x90] sm:$0xff]
                  %534 = vst [vmem:[%s406 + $0xa8] sm:$0xff] %v533
                  %s535 = sadd.s32 1, %s404
                  %p536 = scmp.ge.s32.totalorder %s535, %s395
                  %s537 = scalar_select %p536, 0, %s535
                  %s538 = smul.u32 %s537, 128
                  %s539 = smul.u32 %s537, 128
                  %s540 = scalar_lea.vmem %s169, %s538
                  %s541 = scalar_lea.vmem %s161, %s539 [#allocation4]
                $region74: #{tpu_custom_call.1} parent=68 // loop_footer
                  %s401 = sadd.s32 %s399, 1
                $region75: #{tpu_custom_call.1} parent=68 // loop_footer_branch
                  %398 = sbr.rel target = $region71
                $region76: #{tpu_custom_call.1} parent=68 // loop_exit
                  _
                %s542 = sshrl.u32 %s394, 4
                %s543 = sand.u32 %s394, 15
                %s544 = smul.u32 %s542, 16
                %s545 = smul.u32 128, %s544
                %s546 = sshra.s32 %s545, 4
                %s547 = scalar_lea.vmem %s169, %s546
                %s548 = smul.u32 128, %s544
                %s549 = sshra.s32 %s548, 4
                %s550 = scalar_lea.vmem %s161, %s549 [#allocation4]
                // While loop
                $region77: #{tpu_custom_call.1} parent=68 // loop_pre_header
                  _
                $region78: #{tpu_custom_call.1} parent=68 // loop_header
                  %s554 = sphi 0, %s556
                  %p555 = scmp.ge.s32.totalorder %s554, %s543
                  %s559 = sphi 0, %s572
                  %s560 = sphi %s547, %s575
                  %s561 = sphi %s550, %s576
                $region79: #{tpu_custom_call.1} parent=68 // loop_header_branch
                  %558 = sbr.rel (%p555) target = $region83
                $region80: #{tpu_custom_call.1} parent=68 // loop_body
                  %v562 = vld [vmem:[%s560] sm:$0xff]
                  %563 = vst [vmem:[%s561] sm:$0xff] %v562
                  %v564 = vld [vmem:[%s560 + $0x8] sm:$0xff]
                  %565 = vst [vmem:[%s561 + $0x10] sm:$0xff] %v564
                  %v566 = vld [vmem:[%s560 + $0x10] sm:$0xff]
                  %567 = vst [vmem:[%s561 + $0x20] sm:$0xff] %v566
                  %v568 = vld [vmem:[%s560 + $0x18] sm:$0xff]
                  %569 = vst [vmem:[%s561 + $0x30] sm:$0xff] %v568
                  %s570 = sadd.s32 1, %s559
                  %p571 = scmp.ge.s32.totalorder %s570, %s543
                  %s572 = scalar_select %p571, 0, %s570
                  %s573 = smul.u32 %s572, 8
                  %s574 = smul.u32 %s572, 8
                  %s575 = scalar_lea.vmem %s547, %s573
                  %s576 = scalar_lea.vmem %s550, %s574 [#allocation4]
                $region81: #{tpu_custom_call.1} parent=68 // loop_footer
                  %s556 = sadd.s32 %s554, 1
                $region82: #{tpu_custom_call.1} parent=68 // loop_footer_branch
                  %553 = sbr.rel target = $region78
                $region83: #{tpu_custom_call.1} parent=68 // loop_exit
                  _
                %s577 = sshllo.u32 0, %s389
                loop: start=0, step=1, limit=1
                $region84: #{tpu_custom_call.1} parent=68 // loop_pre_header
                  _
                $region85: #{tpu_custom_call.1} parent=68 // loop_header
                  %s579 = sphi 0, %s583
                  %p580 = scmp.ge.s32.totalorder %s579, 1
                  %s584 = sphi %s391, %s391
                  %s585 = sphi %s393, %s393
                $region86: #{tpu_custom_call.1} parent=68 // loop_header_branch
                  %582 = sbr.rel (%p580) target = $region90
                $region87: #{tpu_custom_call.1} parent=68 // loop_body
                  %v586 = vld [vmem:[%s584] sm:%s577]
                  %587 = vst [vmem:[%s585] sm:%s577] %v586
                  %v588 = vld [vmem:[%s584 + $0x8] sm:%s577]
                  %589 = vst [vmem:[%s585 + $0x10] sm:%s577] %v588
                  %v590 = vld [vmem:[%s584 + $0x10] sm:%s577]
                  %591 = vst [vmem:[%s585 + $0x20] sm:%s577] %v590
                  %v592 = vld [vmem:[%s584 + $0x18] sm:%s577]
                  %593 = vst [vmem:[%s585 + $0x30] sm:%s577] %v592
                $region88: #{tpu_custom_call.1} parent=68 // loop_footer
                  %s583 = sadd.s32 1, %s579
                $region89: #{tpu_custom_call.1} parent=68 // loop_footer_branch
                  %578 = sbr.rel target = $region85
                $region90: #{tpu_custom_call.1} parent=68 // loop_exit
                  _
              $region69: #{tpu_custom_call.1} parent=35 // pred_fallthru
                _
            $region36: #{tpu_custom_call.1} parent=31 // pred_fallthru
              _
            // Predicated region
            $region37: #{tpu_custom_call.1} parent=31 // pred_check
              %p178 = pneg %p174
            $region38: #{tpu_custom_call.1} parent=31 // pred_check_branch
              %180 = sbr.rel (%p178) target = $region40
            $region39: #{tpu_custom_call.1} parent=31 // pred_region
              %s181 = sshllo.u32 0, %s170
              loop: start=0, step=1, limit=1
              $region41: #{tpu_custom_call.1} parent=39 // loop_pre_header
                _
              $region42: #{tpu_custom_call.1} parent=39 // loop_header
                %s183 = sphi 0, %s187
                %p184 = scmp.ge.s32.totalorder %s183, 1
                %s188 = sphi %s169, %s169
                %s189 = sphi %s161, %s161
              $region43: #{tpu_custom_call.1} parent=39 // loop_header_branch
                %186 = sbr.rel (%p184) target = $region47
              $region44: #{tpu_custom_call.1} parent=39 // loop_body
                %v190 = vld [vmem:[%s188] sm:%s181]
                %191 = vst [vmem:[%s189] sm:%s181] %v190
                %v192 = vld [vmem:[%s188 + $0x8] sm:%s181]
                %193 = vst [vmem:[%s189 + $0x10] sm:%s181] %v192
                %v194 = vld [vmem:[%s188 + $0x10] sm:%s181]
                %195 = vst [vmem:[%s189 + $0x20] sm:%s181] %v194
                %v196 = vld [vmem:[%s188 + $0x18] sm:%s181]
                %197 = vst [vmem:[%s189 + $0x30] sm:%s181] %v196
              $region45: #{tpu_custom_call.1} parent=39 // loop_footer
                %s187 = sadd.s32 1, %s183
              $region46: #{tpu_custom_call.1} parent=39 // loop_footer_branch
                %182 = sbr.rel target = $region42
              $region47: #{tpu_custom_call.1} parent=39 // loop_exit
                _
            $region40: #{tpu_custom_call.1} parent=31 // pred_fallthru
              _
          $region32: #{tpu_custom_call.1} parent=27 // pred_fallthru
            _
          %594 = vnop
        $region28: #{tpu_custom_call.1} parent=23 // pred_fallthru
          _
      $region24: #{tpu_custom_call.1} parent=5 // pred_fallthru
        _
      %p595 = scmp.le.s32.totalorder 1, %s10
      %p596 = scmp.lt.s32.totalorder %s10, 3
      %p597 = pnand %p595, %p596
      %p598 = pneg %p597
      // Predicated region
      $region91: #{tpu_custom_call.1} parent=5 // pred_check
        _
      $region92: #{tpu_custom_call.1} parent=5 // pred_check_branch
        %600 = sbr.rel (%p597) target = $region94
      $region93: #{tpu_custom_call.1} parent=5 // pred_region
        %s601 = ssub.s32 %s10, 1
        // Predicated region
        $region95: #{tpu_custom_call.1} parent=93 // pred_check
          %p602 = pneg %p64
        $region96: #{tpu_custom_call.1} parent=93 // pred_check_branch
          %604 = sbr.rel (%p602) target = $region98
        $region97: #{tpu_custom_call.1} parent=93 // pred_region
          %605 = dma.done [#allocation3], 4096
        $region98: #{tpu_custom_call.1} parent=93 // pred_fallthru
          _
        %s606 = sand.u32 %s79, 1
        %s607 = sand.u32 %s79, 1
        %s608 = smul.addr %s607, 64
        %s609 = scalar_lea.vmem [#allocation4], %s608
        // Predicated region
        $region99: #{tpu_custom_call.1} parent=93 // pred_check
          %p610 = pneg %p92
        $region100: #{tpu_custom_call.1} parent=93 // pred_check_branch
          %612 = sbr.rel (%p610) target = $region102
        $region101: #{tpu_custom_call.1} parent=93 // pred_region
          _
        $region102: #{tpu_custom_call.1} parent=93 // pred_fallthru
          _
        %p613 = pneg %p43
        %p614 = pneg %p40
        %p615 = pneg %p64
        %p616 = pneg %p61
        %s617 = sand.u32 %s79, 1
        %s618 = sand.u32 %s79, 1
        %s619 = smul.addr %s618, 64
        %s620 = scalar_lea.vmem [#allocation4], %s619
        %p621 = pneg %p92
        %p622 = pneg %p89
        %p623 = pneg %p120
        %p624 = pneg %p117
        %p625 = scmp.lt.s32.totalorder %s19, 1
        %s626 = scalar_select %p625, %s19, 1
        %p627 = scmp.lt.s32.totalorder %s20, 0
        %s628 = scalar_select %p627, %s20, 0
        %s629 = smul.addr %s626, 4
        %s630 = sadd.s32 %s628, %s629
        %s631 = smul.addr %s630, 8
        %s632 = scalar_lea.vmem %s3, %s631
        %s633 = smul.u32 2, %s20
        %s634 = ssub.s32 1, %s633
        %s635 = smul.u32 512, %s634
        %p636 = scmp.lt.s32.totalorder %s19, 1
        %s637 = scalar_select %p636, %s19, 1
        %p638 = scmp.lt.s32.totalorder %s20, 0
        %s639 = scalar_select %p638, %s20, 0
        %s640 = smul.addr %s637, 4
        %s641 = sadd.s32 %s639, %s640
        %s642 = smul.addr %s641, 8
        %s643 = scalar_lea.vmem %s3, %s642
        %v644 = vld [vmem:[%s609] sm:$0xff]
        %v645 = vld [vmem:[%s609 + $0x8] sm:$0xff]
        %v646 = vld [vmem:[%s609 + $0x10] sm:$0xff]
        %v647 = vld [vmem:[%s609 + $0x18] sm:$0xff]
        %v648 = vld [vmem:[%s609 + $0x20] sm:$0xff]
        %v649 = vld [vmem:[%s609 + $0x28] sm:$0xff]
        %v650 = vld [vmem:[%s609 + $0x30] sm:$0xff]
        %v651 = vld [vmem:[%s609 + $0x38] sm:$0xff]
        %v652 = vld [vmem:[%s0] sm:$0xff]
        %v653 = vld [vmem:[%s0 + $0x8] sm:$0xff]
        %v654 = vld [vmem:[%s0 + $0x10] sm:$0xff]
        %v655 = vld [vmem:[%s0 + $0x18] sm:$0xff]
        %vm656 = vcmask 261120
        %v658 = vsel %vm656, %v652, 0
        %v661 = vsel %vm656, %v653, 0
        %v664 = vsel %vm656, %v654, 0
        %v667 = vsel %vm656, %v655, 0
        %669 = vmatprep.subr.mxu0 %v645
        %670 = vmatpush1.msra.mxu0 %v644
        %671 = vmatprep.subr.mxu0 %v647
        %672 = vmatpush1.msra.mxu0 %v646
        %673 = vmatprep.subr.mxu0 %v649
        %674 = vmatpush1.msra.mxu0 %v648
        %675 = vmatprep.subr.mxu0 %v651
        %676 = vmatpush1.msra.mxu0 %v650
        %677 = vmatprep.subr.mxu0 0.0
        %678 = vmatpush1.msra.mxu0 0.0
        %679 = vmatprep.subr.mxu0 0.0
        %680 = vmatpush1.msra.mxu0 0.0
        %681 = vmatprep.subr.mxu0 0.0
        %682 = vmatpush1.msra.mxu0 0.0
        %683 = vmatprep.subr.mxu0 0.0
        %684 = vmatpush1.msra.mxu0 0.0
        %685 = vmatprep.subr.mxu0 0.0
        %686 = vmatpush1.msra.mxu0 0.0
        %687 = vmatprep.subr.mxu0 0.0
        %688 = vmatpush1.msra.mxu0 0.0
        %689 = vmatprep.subr.mxu0 0.0
        %690 = vmatpush1.msra.mxu0 0.0
        %691 = vmatprep.subr.mxu0 0.0
        %692 = vmatpush1.msra.mxu0 0.0
        %693 = vmatprep.subr.mxu0 0.0
        %694 = vmatpush1.msra.mxu0 0.0
        %695 = vmatprep.subr.mxu0 0.0
        %696 = vmatpush1.msra.mxu0 0.0
        %697 = vmatprep.subr.mxu0 0.0
        %698 = vmatpush1.msra.mxu0 0.0
        %699 = vmatprep.subr.mxu0 0.0
        %700 = vmatpush1.msra.mxu0 0.0
        %701 = vmatprep.subr.mxu0 0.0
        %702 = vmatpush1.msra.mxu0 0.0
        %703 = vmatprep.subr.mxu0 0.0
        %704 = vmatpush1.msra.mxu0 0.0
        %705 = vmatprep.subr.mxu0 0.0
        %706 = vmatpush1.msra.mxu0 0.0
        %707 = vmatprep.subr.mxu0 0.0
        %708 = vmatpush1.msra.mxu0 0.0
        %709 = vmatprep.subr.mxu0 0.0
        %710 = vmatpush1.msra.mxu0 0.0
        %711 = vmatprep.subr.mxu0 0.0
        %712 = vmatpush1.msra.mxu0 0.0
        %713 = vmatprep.subr.mxu0 0.0
        %714 = vmatpush1.msra.mxu0 0.0
        %715 = vmatprep.subr.mxu0 0.0
        %716 = vmatpush1.msra.mxu0 0.0
        %717 = vmatprep.subr.mxu0 0.0
        %718 = vmatpush1.msra.mxu0 0.0
        %719 = vmatprep.subr.mxu0 0.0
        %720 = vmatpush1.msra.mxu0 0.0
        %721 = vmatprep.subr.mxu0 0.0
        %722 = vmatpush1.msra.mxu0 0.0
        %723 = vmatprep.subr.mxu0 0.0
        %724 = vmatpush1.msra.mxu0 0.0
        %725 = vmatprep.subr.mxu0 0.0
        %726 = vmatpush1.msra.mxu0 0.0
        %727 = vmatprep.subr.mxu0 0.0
        %728 = vmatpush1.msra.mxu0 0.0
        %729 = vmatprep.subr.mxu0 0.0
        %730 = vmatpush1.msra.mxu0 0.0
        %731 = vmatprep.subr.mxu0 0.0
        %732 = vmatpush1.msra.mxu0 0.0
        %733 = vmatprep.mubr.f32.mxu0 0.0
        %734 = vmatmul.mubr.f32.gmra.mrb[0].mxu0 %v658
        %v735 = vpop.f32.mrb[0].mxu0
        %v736 = vadd.f32 0.0, %v735
        %v737 = vpop.f32.mrb[0].mxu0
        %v738 = vadd.f32 0.0, %v737
        %739 = vmatprep.mubr.f32.mxu0 0.0
        %740 = vmatmul.mubr.f32.gmra.mrb[0].mxu0 %v661
        %v741 = vpop.f32.mrb[0].mxu0
        %v742 = vadd.f32 0.0, %v741
        %v743 = vpop.f32.mrb[0].mxu0
        %v744 = vadd.f32 0.0, %v743
        %745 = vmatprep.mubr.f32.mxu0 0.0
        %746 = vmatmul.mubr.f32.gmra.mrb[0].mxu0 %v664
        %v747 = vpop.f32.mrb[0].mxu0
        %v748 = vadd.f32 0.0, %v747
        %v749 = vpop.f32.mrb[0].mxu0
        %v750 = vadd.f32 0.0, %v749
        %751 = vmatprep.mubr.f32.mxu0 0.0
        %752 = vmatmul.mubr.f32.gmra.mrb[0].mxu0 %v667
        %v753 = vpop.f32.mrb[0].mxu0
        %v754 = vadd.f32 0.0, %v753
        %v755 = vpop.f32.mrb[0].mxu0
        %v756 = vadd.f32 0.0, %v755
        %757 = vdwg.mxu0
        %v758 = vlaneseq
        %v759 = vand.u32 %v758, 127
        %v760 = vadd.s32 %v759, 128
        %s761 = smul.u32 %s20, 256
        %v762 = vstv %s761
        %v763 = vadd.s32 %v762, %v759
        %v764 = vadd.s32 %v762, %v760
        %vm765 = vcmp.lt.s32.totalorder %v763, 15
        %vm766 = vcmp.lt.s32.totalorder %v764, 15
        %v767 = vsel %vm765, 1, 0
        %v768 = vsel %vm766, 1, 0
        %vm769 = vcmp.eq.s32.totalorder %v767, 1
        %vm770 = vcmp.eq.s32.totalorder %v768, 1
        %v771 = vsel %vm769, %v736, -1e+30
        %v772 = vsel %vm770, %v738, -1e+30
        %v773 = vsel %vm769, %v742, -1e+30
        %v774 = vsel %vm770, %v744, -1e+30
        %v775 = vsel %vm769, %v748, -1e+30
        %v776 = vsel %vm770, %v750, -1e+30
        %v777 = vsel %vm769, %v754, -1e+30
        %v778 = vsel %vm770, %v756, -1e+30
        %779 = vrot.lane.b32.xlu0 %v771, 1
        %v780 = vpop.permute.xlu0 %779
        %781 = vrot.lane.b32.xlu0 %v773, 1
        %v782 = vpop.permute.xlu0 %781
        %783 = vrot.lane.b32.xlu0 %v775, 1
        %v784 = vpop.permute.xlu0 %783
        %785 = vrot.lane.b32.xlu0 %v777, 1
        %v786 = vpop.permute.xlu0 %785
        %787 = vrot.lane.b32.xlu0 %v772, 1
        %v788 = vpop.permute.xlu0 %787
        %789 = vrot.lane.b32.xlu0 %v774, 1
        %v790 = vpop.permute.xlu0 %789
        %791 = vrot.lane.b32.xlu0 %v776, 1
        %v792 = vpop.permute.xlu0 %791
        %793 = vrot.lane.b32.xlu0 %v778, 1
        %v794 = vpop.permute.xlu0 %793
        %vm795 = vcmp.lt.s32.totalorder %v759, 1
        %v796 = vsel %vm795, %v780, %v788
        %v797 = vsel %vm795, %v782, %v790
        %v798 = vsel %vm795, %v784, %v792
        %v799 = vsel %vm795, %v786, %v794
        %v800 = vsel %vm795, %v788, %v780
        %v801 = vsel %vm795, %v790, %v782
        %v802 = vsel %vm795, %v792, %v784
        %v803 = vsel %vm795, %v794, %v786
        %804 = vrot.lane.b32.xlu0 %v771, 127
        %v805 = vpop.permute.xlu0 %804
        %806 = vrot.lane.b32.xlu0 %v773, 127
        %v807 = vpop.permute.xlu0 %806
        %808 = vrot.lane.b32.xlu0 %v775, 127
        %v809 = vpop.permute.xlu0 %808
        %810 = vrot.lane.b32.xlu0 %v777, 127
        %v811 = vpop.permute.xlu0 %810
        %812 = vrot.lane.b32.xlu0 %v772, 127
        %v813 = vpop.permute.xlu0 %812
        %814 = vrot.lane.b32.xlu0 %v774, 127
        %v815 = vpop.permute.xlu0 %814
        %816 = vrot.lane.b32.xlu0 %v776, 127
        %v817 = vpop.permute.xlu0 %816
        %818 = vrot.lane.b32.xlu0 %v778, 127
        %v819 = vpop.permute.xlu0 %818
        %vm820 = vcmp.lt.s32.totalorder %v759, 127
        %v821 = vsel %vm820, %v805, %v813
        %v822 = vsel %vm820, %v807, %v815
        %v823 = vsel %vm820, %v809, %v817
        %v824 = vsel %vm820, %v811, %v819
        %v825 = vsel %vm820, %v813, %v805
        %v826 = vsel %vm820, %v815, %v807
        %v827 = vsel %vm820, %v817, %v809
        %v828 = vsel %vm820, %v819, %v811
        %829 = vrot.lane.b32.xlu0 %v759, 1
        %v830 = vpop.permute.xlu0 %829
        %831 = vrot.lane.b32.xlu0 %v760, 1
        %v832 = vpop.permute.xlu0 %831
        %v833 = vsel %vm795, %v830, %v832
        %v834 = vsel %vm795, %v832, %v830
        %v835 = vxor.u32 %v759, 1
        %v836 = vxor.u32 %v760, 1
        %vm837 = vcmp.eq.s32.totalorder %v834, %v835
        %vm838 = vcmp.eq.s32.totalorder %v833, %v836
        %v839 = vsel %vm837, 1, 0
        %v840 = vsel %vm838, 1, 0
        %v841 = vlaneseq
        %v842 = vshrl.u32 %v841, 7
        %v843 = vsub.s32 0, %v842
        %v844 = vrot.slane %v839, %v843
        %v845 = vlaneseq
        %v846 = vshrl.u32 %v845, 7
        %v847 = vsub.s32 0, %v846
        %v848 = vrot.slane %v840, %v847
        %vm849 = vcmp.eq.s32.totalorder %v844, 1
        %vm850 = vcmp.eq.s32.totalorder %v848, 1
        %v851 = vsel %vm849, %v800, %v821
        %v852 = vsel %vm850, %v796, %v825
        %v853 = vsel %vm849, %v801, %v822
        %v854 = vsel %vm850, %v797, %v826
        %v855 = vsel %vm849, %v802, %v823
        %v856 = vsel %vm850, %v798, %v827
        %v857 = vsel %vm849, %v803, %v824
        %v858 = vsel %vm850, %v799, %v828
        %v859 = vsub.f32 %v771, %v851
        %v860 = vsub.f32 %v772, %v852
        %v861 = vsub.f32 %v773, %v853
        %v862 = vsub.f32 %v774, %v854
        %v863 = vsub.f32 %v775, %v855
        %v864 = vsub.f32 %v776, %v856
        %v865 = vsub.f32 %v777, %v857
        %v866 = vsub.f32 %v778, %v858
        %v867 = vxor.u32 %v859, 2147483648
        %v868 = vxor.u32 %v860, 2147483648
        %v869 = vxor.u32 %v861, 2147483648
        %v870 = vxor.u32 %v862, 2147483648
        %v871 = vxor.u32 %v863, 2147483648
        %v872 = vxor.u32 %v864, 2147483648
        %v873 = vxor.u32 %v865, 2147483648
        %v874 = vxor.u32 %v866, 2147483648
        %v875 = vmul.f32 %v867, 1.442695
        %v876 = vpow.pop %v875
        %v877 = vmul.f32 %v868, 1.442695
        %v878 = vpow.pop %v877
        %v879 = vmul.f32 %v869, 1.442695
        %v880 = vpow.pop %v879
        %v881 = vmul.f32 %v870, 1.442695
        %v882 = vpow.pop %v881
        %v883 = vmul.f32 %v871, 1.442695
        %v884 = vpow.pop %v883
        %v885 = vmul.f32 %v872, 1.442695
        %v886 = vpow.pop %v885
        %v887 = vmul.f32 %v873, 1.442695
        %v888 = vpow.pop %v887
        %v889 = vmul.f32 %v874, 1.442695
        %v890 = vpow.pop %v889
        %v891 = vadd.f32 %v876, 1.0
        %v892 = vadd.f32 %v878, 1.0
        %v893 = vadd.f32 %v880, 1.0
        %v894 = vadd.f32 %v882, 1.0
        %v895 = vadd.f32 %v884, 1.0
        %v896 = vadd.f32 %v886, 1.0
        %v897 = vadd.f32 %v888, 1.0
        %v898 = vadd.f32 %v890, 1.0
        %v899 = vrcp.pop %v891
        %v900 = vmul.f32 1.0, %v899
        %v901 = vrcp.pop %v892
        %v902 = vmul.f32 1.0, %v901
        %v903 = vrcp.pop %v893
        %v904 = vmul.f32 1.0, %v903
        %v905 = vrcp.pop %v894
        %v906 = vmul.f32 1.0, %v905
        %v907 = vrcp.pop %v895
        %v908 = vmul.f32 1.0, %v907
        %v909 = vrcp.pop %v896
        %v910 = vmul.f32 1.0, %v909
        %v911 = vrcp.pop %v897
        %v912 = vmul.f32 1.0, %v911
        %v913 = vrcp.pop %v898
        %v914 = vmul.f32 1.0, %v913
        %v915 = vmul.f32 %v644, %v900
        %v916 = vmul.f32 %v645, %v902
        %v917 = vmul.f32 %v646, %v904
        %v918 = vmul.f32 %v647, %v906
        %v919 = vmul.f32 %v648, %v908
        %v920 = vmul.f32 %v649, %v910
        %v921 = vmul.f32 %v650, %v912
        %v922 = vmul.f32 %v651, %v914
        %v923 = vsel %vm769, %v915, 0.0
        %v924 = vsel %vm770, %v916, 0.0
        %v925 = vsel %vm769, %v917, 0.0
        %v926 = vsel %vm770, %v918, 0.0
        %v927 = vsel %vm769, %v919, 0.0
        %v928 = vsel %vm770, %v920, 0.0
        %v929 = vsel %vm769, %v921, 0.0
        %v930 = vsel %vm770, %v922, 0.0
        %v931 = vld [vmem:[#allocation2] sm:$0xff]
        %v932 = vld [vmem:[#allocation2 + $0x8] sm:$0xff]
        %v933 = vld [vmem:[#allocation2 + $0x10] sm:$0xff]
        %v934 = vld [vmem:[#allocation2 + $0x18] sm:$0xff]
        %v935 = vld [vmem:[#allocation2 + $0x20] sm:$0xff]
        %v936 = vld [vmem:[#allocation2 + $0x28] sm:$0xff]
        %v937 = vld [vmem:[#allocation2 + $0x30] sm:$0xff]
        %v938 = vld [vmem:[#allocation2 + $0x38] sm:$0xff]
        %v939 = vld [vmem:[#allocation2 + $0x40] sm:$0xff]
        %v940 = vld [vmem:[#allocation2 + $0x48] sm:$0xff]
        %v941 = vld [vmem:[#allocation2 + $0x50] sm:$0xff]
        %v942 = vld [vmem:[#allocation2 + $0x58] sm:$0xff]
        %v943 = vld [vmem:[#allocation2 + $0x60] sm:$0xff]
        %v944 = vld [vmem:[#allocation2 + $0x68] sm:$0xff]
        %v945 = vld [vmem:[#allocation2 + $0x70] sm:$0xff]
        %v946 = vld [vmem:[#allocation2 + $0x78] sm:$0xff]
        %v947 = vld [vmem:[#allocation2 + $0x80] sm:$0xff]
        %v948 = vld [vmem:[#allocation2 + $0x88] sm:$0xff]
        %v949 = vld [vmem:[#allocation2 + $0x90] sm:$0xff]
        %v950 = vld [vmem:[#allocation2 + $0x98] sm:$0xff]
        %v951 = vld [vmem:[#allocation2 + $0xa0] sm:$0xff]
        %v952 = vld [vmem:[#allocation2 + $0xa8] sm:$0xff]
        %v953 = vld [vmem:[#allocation2 + $0xb0] sm:$0xff]
        %v954 = vld [vmem:[#allocation2 + $0xb8] sm:$0xff]
        %v955 = vld [vmem:[#allocation2 + $0xc0] sm:$0xff]
        %v956 = vld [vmem:[#allocation2 + $0xc8] sm:$0xff]
        %v957 = vld [vmem:[#allocation2 + $0xd0] sm:$0xff]
        %v958 = vld [vmem:[#allocation2 + $0xd8] sm:$0xff]
        %v959 = vld [vmem:[#allocation2 + $0xe0] sm:$0xff]
        %v960 = vld [vmem:[#allocation2 + $0xe8] sm:$0xff]
        %v961 = vld [vmem:[#allocation2 + $0xf0] sm:$0xff]
        %v962 = vld [vmem:[#allocation2 + $0xf8] sm:$0xff]
        %963 = vmatprep.subr.mxu0 0.0
        %964 = vmatpush1.msra.mxu0 %v931
        %965 = vmatprep.subr.mxu0 0.0
        %966 = vmatpush1.msra.mxu0 %v932
        %967 = vmatprep.subr.mxu0 0.0
        %968 = vmatpush1.msra.mxu0 %v933
        %969 = vmatprep.subr.mxu0 0.0
        %970 = vmatpush1.msra.mxu0 %v934
        %971 = vmatprep.subr.mxu0 0.0
        %972 = vmatpush1.msra.mxu0 %v935
        %973 = vmatprep.subr.mxu0 0.0
        %974 = vmatpush1.msra.mxu0 %v936
        %975 = vmatprep.subr.mxu0 0.0
        %976 = vmatpush1.msra.mxu0 %v937
        %977 = vmatprep.subr.mxu0 0.0
        %978 = vmatpush1.msra.mxu0 %v938
        %979 = vmatprep.subr.mxu0 0.0
        %980 = vmatpush1.msra.mxu0 %v939
        %981 = vmatprep.subr.mxu0 0.0
        %982 = vmatpush1.msra.mxu0 %v940
        %983 = vmatprep.subr.mxu0 0.0
        %984 = vmatpush1.msra.mxu0 %v941
        %985 = vmatprep.subr.mxu0 0.0
        %986 = vmatpush1.msra.mxu0 %v942
        %987 = vmatprep.subr.mxu0 0.0
        %988 = vmatpush1.msra.mxu0 %v943
        %989 = vmatprep.subr.mxu0 0.0
        %990 = vmatpush1.msra.mxu0 %v944
        %991 = vmatprep.subr.mxu0 0.0
        %992 = vmatpush1.msra.mxu0 %v945
        %993 = vmatprep.subr.mxu0 0.0
        %994 = vmatpush1.msra.mxu0 %v946
        %995 = vmatprep.subr.mxu0 0.0
        %996 = vmatpush1.msra.mxu0 %v947
        %997 = vmatprep.subr.mxu0 0.0
        %998 = vmatpush1.msra.mxu0 %v948
        %999 = vmatprep.subr.mxu0 0.0
        %1000 = vmatpush1.msra.mxu0 %v949
        %1001 = vmatprep.subr.mxu0 0.0
        %1002 = vmatpush1.msra.mxu0 %v950
        %1003 = vmatprep.subr.mxu0 0.0
        %1004 = vmatpush1.msra.mxu0 %v951
        %1005 = vmatprep.subr.mxu0 0.0
        %1006 = vmatpush1.msra.mxu0 %v952
        %1007 = vmatprep.subr.mxu0 0.0
        %1008 = vmatpush1.msra.mxu0 %v953
        %1009 = vmatprep.subr.mxu0 0.0
        %1010 = vmatpush1.msra.mxu0 %v954
        %1011 = vmatprep.subr.mxu0 0.0
        %1012 = vmatpush1.msra.mxu0 %v955
        %1013 = vmatprep.subr.mxu0 0.0
        %1014 = vmatpush1.msra.mxu0 %v956
        %1015 = vmatprep.subr.mxu0 0.0
        %1016 = vmatpush1.msra.mxu0 %v957
        %1017 = vmatprep.subr.mxu0 0.0
        %1018 = vmatpush1.msra.mxu0 %v958
        %1019 = vmatprep.subr.mxu0 0.0
        %1020 = vmatpush1.msra.mxu0 %v959
        %1021 = vmatprep.subr.mxu0 0.0
        %1022 = vmatpush1.msra.mxu0 %v960
        %1023 = vmatprep.subr.mxu0 0.0
        %1024 = vmatpush1.msra.mxu0 %v961
        %1025 = vmatprep.subr.mxu0 0.0
        %1026 = vmatpush1.msra.mxu0 %v962
        %1027 = vmatprep.mubr.f32.mxu0 %v924
        %1028 = vmatmul.mubr.f32.gmra.mrb[0].mxu0 %v923
        %v1029 = vpop.f32.mrb[0].mxu0
        %v1030 = vadd.f32 0.0, %v1029
        %v1031 = vpop.f32.mrb[0].mxu0
        %1032 = vmatprep.mubr.f32.mxu0 %v926
        %1033 = vmatmul.mubr.f32.gmra.mrb[0].mxu0 %v925
        %v1034 = vpop.f32.mrb[0].mxu0
        %v1035 = vadd.f32 0.0, %v1034
        %v1036 = vpop.f32.mrb[0].mxu0
        %1037 = vmatprep.mubr.f32.mxu0 %v928
        %1038 = vmatmul.mubr.f32.gmra.mrb[0].mxu0 %v927
        %v1039 = vpop.f32.mrb[0].mxu0
        %v1040 = vadd.f32 0.0, %v1039
        %v1041 = vpop.f32.mrb[0].mxu0
        %1042 = vmatprep.mubr.f32.mxu0 %v930
        %1043 = vmatmul.mubr.f32.gmra.mrb[0].mxu0 %v929
        %v1044 = vpop.f32.mrb[0].mxu0
        %v1045 = vadd.f32 0.0, %v1044
        %v1046 = vpop.f32.mrb[0].mxu0
        %1047 = vdwg.mxu0
        %1048 = vst [vmem:[%s643] sm:$0xff] %v1030
        %1049 = vst [vmem:[%s643 + $0x8] sm:$0xff] %v1035
        %1050 = vst [vmem:[%s643 + $0x10] sm:$0xff] %v1040
        %1051 = vst [vmem:[%s643 + $0x18] sm:$0xff] %v1045
        %p1052 = scmp.lt.s32.totalorder %s19, 1
        %s1053 = scalar_select %p1052, %s19, 1
        %p1054 = scmp.lt.s32.totalorder %s20, 0
        %s1055 = scalar_select %p1054, %s20, 0
        %s1056 = smul.addr %s1053, 4
        %s1057 = sadd.s32 %s1055, %s1056
        %s1058 = smul.addr %s1057, 8
        %s1059 = scalar_lea.vmem %s3, %s1058
        // Predicated region
        $region103: #{tpu_custom_call.1} parent=93 // pred_check
          %p1060 = pneg %p117
        $region104: #{tpu_custom_call.1} parent=93 // pred_check_branch
          %1062 = sbr.rel (%p1060) target = $region106
        $region105: #{tpu_custom_call.1} parent=93 // pred_region
          _
        $region106: #{tpu_custom_call.1} parent=93 // pred_fallthru
          _
      $region94: #{tpu_custom_call.1} parent=5 // pred_fallthru
        _
      %p1063 = scmp.le.s32.totalorder 2, %s10
      // Predicated region
      $region107: #{tpu_custom_call.1} parent=5 // pred_check
        %p1064 = pneg %p1063
      $region108: #{tpu_custom_call.1} parent=5 // pred_check_branch
        %1066 = sbr.rel (%p1064) target = $region110
      $region109: #{tpu_custom_call.1} parent=5 // pred_region
        %s1067 = ssub.s32 %s10, 2
        // Predicated region
        $region111: #{tpu_custom_call.1} parent=109 // pred_check
          %p1068 = pneg %p123
        $region112: #{tpu_custom_call.1} parent=109 // pred_check_branch
          %1070 = sbr.rel (%p1068) target = $region114
        $region113: #{tpu_custom_call.1} parent=109 // pred_region
          %p1071 = scmp.lt.s32.totalorder %s21, 1
          %s1072 = scalar_select %p1071, %s21, 1
          %p1073 = scmp.lt.s32.totalorder %s22, 0
          %s1074 = scalar_select %p1073, %s22, 0
          %s1075 = smul.addr %s1072, 4
          %s1076 = sadd.s32 %s1074, %s1075
          %s1077 = smul.addr %s1076, 8
          %s1078 = scalar_lea.vmem %s3, %s1077
        $region114: #{tpu_custom_call.1} parent=109 // pred_fallthru
          _
      $region110: #{tpu_custom_call.1} parent=5 // pred_fallthru
        _
    $region6: #{tpu_custom_call.1} parent=1 // loop_footer
      %s14 = sadd.s32 1, %s10
    $region7: #{tpu_custom_call.1} parent=1 // loop_footer_branch
      %9 = sbr.rel target = $region3
    $region8: #{tpu_custom_call.1} parent=1 // loop_exit
      _
    %1079 = vsyncpa [#allocation3], 1
    %s1080 = scalar_lea.sflag [#allocation3], 1
    %1081 = vsyncpa %s1080, 1

</llo_original>
